<compile_context>
chip_gen: v5e
topology: v5e:2x2
jax: 0.10.0
libtpu: 0.0.40
codegen_flags: <defaults>
</compile_context>

<pallas_src>
import functools

import jax
import jax.numpy as jnp
from jax.experimental import pallas as pl
from jax.experimental.pallas import tpu as pltpu

# ---------------- model dims (small, consistent with the module) ----------------
B, L, H, W = 2, 8, 6, 4           # batch, seq-len, graph nodes, per-node features
GCN_HID = 8                       # gcn_hid_dim
GCN_OUT = W                       # gcn_out_dim must equal W (reshape in GCN.forward)
RNN_IN = H * W                    # rnn_in_features
RNN_HID = 32                      # rnn_hidden_features
RNN_OUT = 16                      # rnn_out_features
FINAL_OUT = 6                     # final_outfeatures
GPAD = 8                          # sublane-aligned padding for the stacked GCN features


# ------------------------------- fused kernel -----------------------------------
def _fused_kernel(n, Hx, Wx, Bx, Lx, gpad,
                  x_ref, adj_ref, k1_ref, b1_ref, k2_ref, b2_ref,
                  wih_ref, brnn_ref, whh_ref, wout_ref, bout_ref,
                  wmlp_ref, bmlp_ref, o_ref, gstk_ref, res_ref):
    f32 = jnp.float32
    adj = adj_ref[...]                                                    # (H, H) raw adjacency

    # -------- GCN over all n=B*L slices, lane-dense (H, C*n) layout --------
    # x_ref: (H, W*n), column = w*n + j  with time-major slice j = t*B + b.
    s1 = jnp.dot(x_ref[...], k1_ref[...], preferred_element_type=f32)     # (H, HID*n) = (6, 128)
    h1 = jnp.maximum(
        jnp.dot(adj, s1, preferred_element_type=f32) + b1_ref[...], 0.0)  # adj @ X, 128-lane RHS
    # TODO(synk): F.dropout between gc1/gc2 is identity in inference mode (no train-mode RNG).
    s2 = jnp.dot(h1, k2_ref[...], preferred_element_type=f32)             # (H, W*n) = (6, 64)
    o2 = jnp.dot(adj, s2, preferred_element_type=f32) + b2_ref[...]       # (6, 64)

    # -------- log_softmax over the W feature blocks (n=16 lanes each), stable --------
    blk = [o2[:, w * n:(w + 1) * n] for w in range(Wx)]                   # Wx x (6, 16)
    m = blk[0]
    for w in range(1, Wx):
        m = jnp.maximum(m, blk[w])
    ssum = jnp.exp(blk[0] - m)
    for w in range(1, Wx):
        ssum = ssum + jnp.exp(blk[w] - m)
    logz = m + jnp.log(ssum)

    # Stack the log-softmaxed blocks into a sublane-aligned scratch (no concatenate):
    # rows w*gpad + h hold feature w of node h; the 2 pad rows per block stay zero.
    gstk_ref[...] = jnp.zeros(gstk_ref.shape, gstk_ref.dtype)
    for w in range(Wx):
        gstk_ref[w * gpad:w * gpad + Hx, :] = blk[w] - logz

    # -------- RNN input projection: ONE matmul over the full (padded) H*W contraction --------
    zt = (jnp.dot(wih_ref[...], gstk_ref[...], preferred_element_type=f32)
          + brnn_ref[...])                                                # (RNN_HID, n) = (32, 16)

    # -------- RNN recurrence (transposed: hidden on sublanes, batch on lanes) --------
    # TODO(synk): W_hh could be kept resident in the MXU weight registers across the 8 steps
    # via pltpu.matmul_push_rhs/matmul_acc_lhs; kept as jnp.dot for lowering robustness.
    whh = whh_ref[...]                                                    # (32, 32) = W_hh (raw)
    hT = jnp.tanh(zt[:, 0:Bx])                                            # h0 == 0 -> skip W_hh dot
    res_ref[:, 0:Bx] = hT
    for t in range(1, Lx):
        hT = jnp.tanh(zt[:, t * Bx:(t + 1) * Bx]
                      + jnp.dot(whh, hT, preferred_element_type=f32))
        res_ref[:, t * Bx:(t + 1) * Bx] = hT                              # scratch store, no concat

    # -------- output Linear + ReLU, then final MLP (still transposed) --------
    rT = jnp.maximum(
        jnp.dot(wout_ref[...], res_ref[...], preferred_element_type=f32)
        + bout_ref[...], 0.0)                                             # (RNN_OUT, n) = (16, 16)
    o_ref[...] = (jnp.dot(wmlp_ref[...], rT, preferred_element_type=f32)
                  + bmlp_ref[...])                                        # (FINAL_OUT, n) = (6, 16)


# ------------------------- one-time parameter preparation -------------------------
def prepare_params(params, adj):
    """All layout / permutation / padding work, hoisted out of the per-call hot path."""
    n = B * L
    f32 = jnp.float32
    eye_n = jnp.eye(n, dtype=f32)

    # RNN input weight, columns permuted+padded to match the gstk row layout (w*GPAD + h).
    w_ih = params["w_ih_t"].T.reshape(RNN_HID, H, W)           # [r, h, w]
    wih_pad = jnp.pad(jnp.transpose(w_ih, (0, 2, 1)),          # [r, w, h]
                      ((0, 0), (0, 0), (0, GPAD - H))).reshape(RNN_HID, W * GPAD)

    return {
        "adj": adj.astype(f32),                                # (6, 6) raw adjacency
        "k1": jnp.kron(params["w1"].astype(f32), eye_n),       # (W*n, HID*n) block weight
        "b1": jnp.repeat(params["b1"].astype(f32), n, axis=1), # (1, HID*n)
        "k2": jnp.kron(params["w2"].astype(f32), eye_n),       # (HID*n, W*n)
        "b2": jnp.repeat(params["b2"].astype(f32), n, axis=1), # (1, W*n)
        "wih": wih_pad.astype(f32),                            # (RNN_HID, W*GPAD)
        "brnn": (params["b_ih"] + params["b_hh"]).reshape(RNN_HID, 1).astype(f32),
        "whh": params["w_hh_t"].T.astype(f32),                 # (RNN_HID, RNN_HID) = W_hh
        "wout": params["w_out_t"].T.astype(f32),               # (RNN_OUT, RNN_HID)
        "bout": params["b_out"].reshape(RNN_OUT, 1).astype(f32),
        "wmlp": params["w_mlp_t"].T.astype(f32),               # (FINAL_OUT, RNN_OUT)
        "bmlp": params["b_mlp"].reshape(FINAL_OUT, 1).astype(f32),
    }


# --------------------------------- forward wrapper ---------------------------------
@jax.jit
def citybike_forward(x, prep):
    Bx, Lx, Hx, Wx = x.shape
    n = Bx * Lx
    # Lane-dense input layout: (H, W*n), column = w*n + (t*B + b)   (time-major slices).
    x_p = jnp.transpose(x, (2, 3, 1, 0)).reshape(Hx, Wx * n).astype(jnp.float32)

    kernel = functools.partial(_fused_kernel, n, Hx, Wx, Bx, Lx, GPAD)
    in_specs = [pl.BlockSpec(memory_space=pltpu.MemorySpace.VMEM) for _ in range(13)]
    out_spec = pl.BlockSpec(memory_space=pltpu.MemorySpace.VMEM)

    y_tm = pl.pallas_call(
        kernel,
        out_shape=jax.ShapeDtypeStruct((FINAL_OUT, n), jnp.float32),
        in_specs=in_specs,
        out_specs=out_spec,
        scratch_shapes=[
            pltpu.VMEM((Wx * GPAD, n), jnp.float32),   # stacked log-softmax features
            pltpu.VMEM((RNN_HID, n), jnp.float32),     # RNN hidden states (transposed)
        ],
    )(x_p, prep["adj"], prep["k1"], prep["b1"], prep["k2"], prep["b2"],
      prep["wih"], prep["brnn"], prep["whh"], prep["wout"], prep["bout"],
      prep["wmlp"], prep["bmlp"])

    # (FINAL_OUT, n) time-major -> (B, L, FINAL_OUT); 384 B reorder, fused by XLA.
    return y_tm.T.reshape(Lx, Bx, FINAL_OUT).transpose(1, 0, 2)


# ----------------------------- pure-JAX reference ---------------------------------
def reference_forward(x, adj, p):
    s1 = jnp.einsum("blhw,wk->blhk", x, p["w1"])
    h1 = jax.nn.relu(jnp.einsum("ij,bljk->blik", adj, s1) + p["b1"])
    s2 = jnp.einsum("blhk,ko->blho", h1, p["w2"])
    o2 = jnp.einsum("ij,bljo->blio", adj, s2) + p["b2"]
    g = jax.nn.log_softmax(o2, axis=-1)                     # (B, L, H, W)
    seq = g.reshape(B, L, H * W)
    h = jnp.zeros((B, RNN_HID), jnp.float32)
    hs = []
    for t in range(L):
        h = jnp.tanh(seq[:, t] @ p["w_ih_t"] + h @ p["w_hh_t"]
                     + p["b_ih"] + p["b_hh"])
        hs.append(h)
    res = jnp.stack(hs, axis=1)                             # (B, L, RNN_HID)
    r = jax.nn.relu(res @ p["w_out_t"] + p["b_out"])
    return r @ p["w_mlp_t"] + p["b_mlp"]


# ----------------------------------- main ------------------------------------------
def init_params(key):
    ks = jax.random.split(key, 12)
    f = lambda k, shape, s=0.1: (s * jax.random.normal(k, shape)).astype(jnp.float32)
    return {
        "w1": f(ks[0], (W, GCN_HID)),
        "b1": f(ks[1], (1, GCN_HID)),
        "w2": f(ks[2], (GCN_HID, GCN_OUT)),
        "b2": f(ks[3], (1, GCN_OUT)),
        "w_ih_t": f(ks[4], (RNN_IN, RNN_HID)),     # = W_ih.T
        "w_hh_t": f(ks[5], (RNN_HID, RNN_HID)),    # = W_hh.T
        "b_ih": f(ks[6], (1, RNN_HID)),
        "b_hh": f(ks[7], (1, RNN_HID)),
        "w_out_t": f(ks[8], (RNN_HID, RNN_OUT)),   # = Linear.weight.T
        "b_out": f(ks[9], (1, RNN_OUT)),
        "w_mlp_t": f(ks[10], (RNN_OUT, FINAL_OUT)),
        "b_mlp": f(ks[11], (1, FINAL_OUT)),
    }


if __name__ == "__main__":
    key = jax.random.PRNGKey(0)
    k_x, k_adj, k_p = jax.random.split(key, 3)
    x = jax.random.normal(k_x, (B, L, H, W), dtype=jnp.float32)
    adj = jax.random.normal(k_adj, (H, H), dtype=jnp.float32)
    params = init_params(k_p)

    prep = prepare_params(params, adj)          # one-time prep, outside the hot path

    out = citybike_forward(x, prep)
    out = jax.block_until_ready(out)

    ref = reference_forward(x, adj, params)
    assert out.shape == (B, L, FINAL_OUT), out.shape
    max_err = float(jnp.max(jnp.abs(out - ref)))
    assert jnp.allclose(out, ref, atol=1e-4, rtol=1e-4), max_err

    print("KERNEL_OK")
</pallas_src>

<mosaic_0001>
module attributes {stable_mosaic.version = 11 : i64} {
  func.func @_fused_kernel(%arg0: memref<6x64xf32, #tpu.memory_space<vmem>>, %arg1: memref<6x6xf32, #tpu.memory_space<vmem>>, %arg2: memref<64x128xf32, #tpu.memory_space<vmem>>, %arg3: memref<1x128xf32, #tpu.memory_space<vmem>>, %arg4: memref<128x64xf32, #tpu.memory_space<vmem>>, %arg5: memref<1x64xf32, #tpu.memory_space<vmem>>, %arg6: memref<32x32xf32, #tpu.memory_space<vmem>>, %arg7: memref<32x1xf32, #tpu.memory_space<vmem>>, %arg8: memref<32x32xf32, #tpu.memory_space<vmem>>, %arg9: memref<16x32xf32, #tpu.memory_space<vmem>>, %arg10: memref<16x1xf32, #tpu.memory_space<vmem>>, %arg11: memref<6x16xf32, #tpu.memory_space<vmem>>, %arg12: memref<6x1xf32, #tpu.memory_space<vmem>>, %arg13: memref<6x16xf32, #tpu.memory_space<vmem>>, %arg14: memref<32x16xf32, #tpu.memory_space<vmem>>, %arg15: memref<32x16xf32, #tpu.memory_space<vmem>>) attributes {dimension_semantics = [], scalar_prefetch = 0 : i64, scratch_operands = 2 : i64, tpu.core_type = #tpu.core_type<tc>} {
    %c0 = arith.constant 0 : index
    %c0_0 = arith.constant 0 : index
    %0 = vector.load %arg1[%c0, %c0_0] : memref<6x6xf32, #tpu.memory_space<vmem>>, vector<6x6xf32>
    %c0_1 = arith.constant 0 : index
    %c0_2 = arith.constant 0 : index
    %1 = vector.load %arg0[%c0_1, %c0_2] : memref<6x64xf32, #tpu.memory_space<vmem>>, vector<6x64xf32>
    %c0_3 = arith.constant 0 : index
    %c0_4 = arith.constant 0 : index
    %2 = vector.load %arg2[%c0_3, %c0_4] : memref<64x128xf32, #tpu.memory_space<vmem>>, vector<64x128xf32>
    %cst = arith.constant dense<0.000000e+00> : vector<6x128xf32>
    %3 = tpu.matmul %1, %2, %cst {dimension_numbers = #tpu.dot_dimension_numbers<[1], [0], [0], [1], [0, 0, 1, 1], [], []>} : vector<6x64xf32>, vector<64x128xf32>, vector<6x128xf32> -> vector<6x128xf32>
    %cst_5 = arith.constant dense<0.000000e+00> : vector<6x128xf32>
    %4 = tpu.matmul %0, %3, %cst_5 {dimension_numbers = #tpu.dot_dimension_numbers<[1], [0], [0], [1], [0, 0, 1, 1], [], []>} : vector<6x6xf32>, vector<6x128xf32>, vector<6x128xf32> -> vector<6x128xf32>
    %c0_6 = arith.constant 0 : index
    %c0_7 = arith.constant 0 : index
    %5 = vector.load %arg3[%c0_6, %c0_7] : memref<1x128xf32, #tpu.memory_space<vmem>>, vector<1x128xf32>
    %6 = vector.broadcast %5 : vector<1x128xf32> to vector<6x128xf32>
    %7 = arith.addf %4, %6 : vector<6x128xf32>
    %cst_8 = arith.constant 0.000000e+00 : f32
    %8 = vector.broadcast %cst_8 : f32 to vector<6x128xf32>
    %9 = arith.maximumf %7, %8 : vector<6x128xf32>
    %c0_9 = arith.constant 0 : index
    %c0_10 = arith.constant 0 : index
    %10 = vector.load %arg4[%c0_9, %c0_10] : memref<128x64xf32, #tpu.memory_space<vmem>>, vector<128x64xf32>
    %cst_11 = arith.constant dense<0.000000e+00> : vector<6x64xf32>
    %11 = tpu.matmul %9, %10, %cst_11 {dimension_numbers = #tpu.dot_dimension_numbers<[1], [0], [0], [1], [0, 0, 1, 1], [], []>} : vector<6x128xf32>, vector<128x64xf32>, vector<6x64xf32> -> vector<6x64xf32>
    %cst_12 = arith.constant dense<0.000000e+00> : vector<6x64xf32>
    %12 = tpu.matmul %0, %11, %cst_12 {dimension_numbers = #tpu.dot_dimension_numbers<[1], [0], [0], [1], [0, 0, 1, 1], [], []>} : vector<6x6xf32>, vector<6x64xf32>, vector<6x64xf32> -> vector<6x64xf32>
    %c0_13 = arith.constant 0 : index
    %c0_14 = arith.constant 0 : index
    %13 = vector.load %arg5[%c0_13, %c0_14] : memref<1x64xf32, #tpu.memory_space<vmem>>, vector<1x64xf32>
    %14 = vector.broadcast %13 : vector<1x64xf32> to vector<6x64xf32>
    %15 = arith.addf %12, %14 : vector<6x64xf32>
    %16 = vector.extract_strided_slice %15 {offsets = [0, 0], sizes = [6, 16], strides = [1, 1]} : vector<6x64xf32> to vector<6x16xf32>
    %17 = vector.extract_strided_slice %15 {offsets = [0, 16], sizes = [6, 16], strides = [1, 1]} : vector<6x64xf32> to vector<6x16xf32>
    %18 = vector.extract_strided_slice %15 {offsets = [0, 32], sizes = [6, 16], strides = [1, 1]} : vector<6x64xf32> to vector<6x16xf32>
    %19 = vector.extract_strided_slice %15 {offsets = [0, 48], sizes = [6, 16], strides = [1, 1]} : vector<6x64xf32> to vector<6x16xf32>
    %20 = arith.maximumf %16, %17 : vector<6x16xf32>
    %21 = arith.maximumf %20, %18 : vector<6x16xf32>
    %22 = arith.maximumf %21, %19 : vector<6x16xf32>
    %23 = arith.subf %16, %22 : vector<6x16xf32>
    %24 = math.exp %23 : vector<6x16xf32>
    %25 = arith.subf %17, %22 : vector<6x16xf32>
    %26 = math.exp %25 : vector<6x16xf32>
    %27 = arith.addf %24, %26 : vector<6x16xf32>
    %28 = arith.subf %18, %22 : vector<6x16xf32>
    %29 = math.exp %28 : vector<6x16xf32>
    %30 = arith.addf %27, %29 : vector<6x16xf32>
    %31 = arith.subf %19, %22 : vector<6x16xf32>
    %32 = math.exp %31 : vector<6x16xf32>
    %33 = arith.addf %30, %32 : vector<6x16xf32>
    %34 = math.log %33 : vector<6x16xf32>
    %35 = arith.addf %22, %34 : vector<6x16xf32>
    %cst_15 = arith.constant 0.000000e+00 : f32
    %36 = vector.broadcast %cst_15 : f32 to vector<32x16xf32>
    %c0_16 = arith.constant 0 : index
    %c0_17 = arith.constant 0 : index
    %37 = vector.load %arg14[%c0_16, %c0_17] : memref<32x16xf32, #tpu.memory_space<vmem>>, vector<32x16xf32>
    tpu.vector_store %arg14[%c0_16, %c0_17], %36 {strides = array<i32>} : memref<32x16xf32, #tpu.memory_space<vmem>>, vector<32x16xf32>,
    %38 = arith.subf %16, %35 : vector<6x16xf32>
    %c0_18 = arith.constant 0 : index
    %c0_19 = arith.constant 0 : index
    %39 = vector.load %arg14[%c0_18, %c0_19] : memref<32x16xf32, #tpu.memory_space<vmem>>, vector<6x16xf32>
    tpu.vector_store %arg14[%c0_18, %c0_19], %38 {strides = array<i32>} : memref<32x16xf32, #tpu.memory_space<vmem>>, vector<6x16xf32>,
    %40 = arith.subf %17, %35 : vector<6x16xf32>
    %c8 = arith.constant 8 : index
    %c0_20 = arith.constant 0 : index
    %41 = vector.load %arg14[%c8, %c0_20] : memref<32x16xf32, #tpu.memory_space<vmem>>, vector<6x16xf32>
    tpu.vector_store %arg14[%c8, %c0_20], %40 {strides = array<i32>} : memref<32x16xf32, #tpu.memory_space<vmem>>, vector<6x16xf32>,
    %42 = arith.subf %18, %35 : vector<6x16xf32>
    %c16 = arith.constant 16 : index
    %c0_21 = arith.constant 0 : index
    %43 = vector.load %arg14[%c16, %c0_21] : memref<32x16xf32, #tpu.memory_space<vmem>>, vector<6x16xf32>
    tpu.vector_store %arg14[%c16, %c0_21], %42 {strides = array<i32>} : memref<32x16xf32, #tpu.memory_space<vmem>>, vector<6x16xf32>,
    %44 = arith.subf %19, %35 : vector<6x16xf32>
    %c24 = arith.constant 24 : index
    %c0_22 = arith.constant 0 : index
    %45 = vector.load %arg14[%c24, %c0_22] : memref<32x16xf32, #tpu.memory_space<vmem>>, vector<6x16xf32>
    tpu.vector_store %arg14[%c24, %c0_22], %44 {strides = array<i32>} : memref<32x16xf32, #tpu.memory_space<vmem>>, vector<6x16xf32>,
    %c0_23 = arith.constant 0 : index
    %c0_24 = arith.constant 0 : index
    %46 = vector.load %arg6[%c0_23, %c0_24] : memref<32x32xf32, #tpu.memory_space<vmem>>, vector<32x32xf32>
    %c0_25 = arith.constant 0 : index
    %c0_26 = arith.constant 0 : index
    %47 = vector.load %arg14[%c0_25, %c0_26] : memref<32x16xf32, #tpu.memory_space<vmem>>, vector<32x16xf32>
    %cst_27 = arith.constant dense<0.000000e+00> : vector<32x16xf32>
    %48 = tpu.matmul %46, %47, %cst_27 {dimension_numbers = #tpu.dot_dimension_numbers<[1], [0], [0], [1], [0, 0, 1, 1], [], []>} : vector<32x32xf32>, vector<32x16xf32>, vector<32x16xf32> -> vector<32x16xf32>
    %c0_28 = arith.constant 0 : index
    %c0_29 = arith.constant 0 : index
    %49 = vector.load %arg7[%c0_28, %c0_29] : memref<32x1xf32, #tpu.memory_space<vmem>>, vector<32x1xf32>
    %50 = vector.broadcast %49 : vector<32x1xf32> to vector<32x16xf32>
    %51 = arith.addf %48, %50 : vector<32x16xf32>
    %c0_30 = arith.constant 0 : index
    %c0_31 = arith.constant 0 : index
    %52 = vector.load %arg8[%c0_30, %c0_31] : memref<32x32xf32, #tpu.memory_space<vmem>>, vector<32x32xf32>
    %53 = vector.extract_strided_slice %51 {offsets = [0, 0], sizes = [32, 2], strides = [1, 1]} : vector<32x16xf32> to vector<32x2xf32>
    %54 = math.tanh %53 : vector<32x2xf32>
    %c0_32 = arith.constant 0 : index
    %c0_33 = arith.constant 0 : index
    %55 = vector.load %arg15[%c0_32, %c0_33] : memref<32x16xf32, #tpu.memory_space<vmem>>, vector<32x2xf32>
    tpu.vector_store %arg15[%c0_32, %c0_33], %54 {strides = array<i32>} : memref<32x16xf32, #tpu.memory_space<vmem>>, vector<32x2xf32>,
    %56 = vector.extract_strided_slice %51 {offsets = [0, 2], sizes = [32, 2], strides = [1, 1]} : vector<32x16xf32> to vector<32x2xf32>
    %cst_34 = arith.constant dense<0.000000e+00> : vector<32x2xf32>
    %57 = tpu.matmul %52, %54, %cst_34 {dimension_numbers = #tpu.dot_dimension_numbers<[1], [0], [0], [1], [0, 0, 1, 1], [], []>} : vector<32x32xf32>, vector<32x2xf32>, vector<32x2xf32> -> vector<32x2xf32>
    %58 = arith.addf %56, %57 : vector<32x2xf32>
    %59 = math.tanh %58 : vector<32x2xf32>
    %c0_35 = arith.constant 0 : index
    %c2 = arith.constant 2 : index
    %60 = vector.load %arg15[%c0_35, %c2] : memref<32x16xf32, #tpu.memory_space<vmem>>, vector<32x2xf32>
    tpu.vector_store %arg15[%c0_35, %c2], %59 {strides = array<i32>} : memref<32x16xf32, #tpu.memory_space<vmem>>, vector<32x2xf32>,
    %61 = vector.extract_strided_slice %51 {offsets = [0, 4], sizes = [32, 2], strides = [1, 1]} : vector<32x16xf32> to vector<32x2xf32>
    %cst_36 = arith.constant dense<0.000000e+00> : vector<32x2xf32>
    %62 = tpu.matmul %52, %59, %cst_36 {dimension_numbers = #tpu.dot_dimension_numbers<[1], [0], [0], [1], [0, 0, 1, 1], [], []>} : vector<32x32xf32>, vector<32x2xf32>, vector<32x2xf32> -> vector<32x2xf32>
    %63 = arith.addf %61, %62 : vector<32x2xf32>
    %64 = math.tanh %63 : vector<32x2xf32>
    %c0_37 = arith.constant 0 : index
    %c4 = arith.constant 4 : index
    %65 = vector.load %arg15[%c0_37, %c4] : memref<32x16xf32, #tpu.memory_space<vmem>>, vector<32x2xf32>
    tpu.vector_store %arg15[%c0_37, %c4], %64 {strides = array<i32>} : memref<32x16xf32, #tpu.memory_space<vmem>>, vector<32x2xf32>,
    %66 = vector.extract_strided_slice %51 {offsets = [0, 6], sizes = [32, 2], strides = [1, 1]} : vector<32x16xf32> to vector<32x2xf32>
    %cst_38 = arith.constant dense<0.000000e+00> : vector<32x2xf32>
    %67 = tpu.matmul %52, %64, %cst_38 {dimension_numbers = #tpu.dot_dimension_numbers<[1], [0], [0], [1], [0, 0, 1, 1], [], []>} : vector<32x32xf32>, vector<32x2xf32>, vector<32x2xf32> -> vector<32x2xf32>
    %68 = arith.addf %66, %67 : vector<32x2xf32>
    %69 = math.tanh %68 : vector<32x2xf32>
    %c0_39 = arith.constant 0 : index
    %c6 = arith.constant 6 : index
    %70 = vector.load %arg15[%c0_39, %c6] : memref<32x16xf32, #tpu.memory_space<vmem>>, vector<32x2xf32>
    tpu.vector_store %arg15[%c0_39, %c6], %69 {strides = array<i32>} : memref<32x16xf32, #tpu.memory_space<vmem>>, vector<32x2xf32>,
    %71 = vector.extract_strided_slice %51 {offsets = [0, 8], sizes = [32, 2], strides = [1, 1]} : vector<32x16xf32> to vector<32x2xf32>
    %cst_40 = arith.constant dense<0.000000e+00> : vector<32x2xf32>
    %72 = tpu.matmul %52, %69, %cst_40 {dimension_numbers = #tpu.dot_dimension_numbers<[1], [0], [0], [1], [0, 0, 1, 1], [], []>} : vector<32x32xf32>, vector<32x2xf32>, vector<32x2xf32> -> vector<32x2xf32>
    %73 = arith.addf %71, %72 : vector<32x2xf32>
    %74 = math.tanh %73 : vector<32x2xf32>
    %c0_41 = arith.constant 0 : index
    %c8_42 = arith.constant 8 : index
    %75 = vector.load %arg15[%c0_41, %c8_42] : memref<32x16xf32, #tpu.memory_space<vmem>>, vector<32x2xf32>
    tpu.vector_store %arg15[%c0_41, %c8_42], %74 {strides = array<i32>} : memref<32x16xf32, #tpu.memory_space<vmem>>, vector<32x2xf32>,
    %76 = vector.extract_strided_slice %51 {offsets = [0, 10], sizes = [32, 2], strides = [1, 1]} : vector<32x16xf32> to vector<32x2xf32>
    %cst_43 = arith.constant dense<0.000000e+00> : vector<32x2xf32>
    %77 = tpu.matmul %52, %74, %cst_43 {dimension_numbers = #tpu.dot_dimension_numbers<[1], [0], [0], [1], [0, 0, 1, 1], [], []>} : vector<32x32xf32>, vector<32x2xf32>, vector<32x2xf32> -> vector<32x2xf32>
    %78 = arith.addf %76, %77 : vector<32x2xf32>
    %79 = math.tanh %78 : vector<32x2xf32>
    %c0_44 = arith.constant 0 : index
    %c10 = arith.constant 10 : index
    %80 = vector.load %arg15[%c0_44, %c10] : memref<32x16xf32, #tpu.memory_space<vmem>>, vector<32x2xf32>
    tpu.vector_store %arg15[%c0_44, %c10], %79 {strides = array<i32>} : memref<32x16xf32, #tpu.memory_space<vmem>>, vector<32x2xf32>,
    %81 = vector.extract_strided_slice %51 {offsets = [0, 12], sizes = [32, 2], strides = [1, 1]} : vector<32x16xf32> to vector<32x2xf32>
    %cst_45 = arith.constant dense<0.000000e+00> : vector<32x2xf32>
    %82 = tpu.matmul %52, %79, %cst_45 {dimension_numbers = #tpu.dot_dimension_numbers<[1], [0], [0], [1], [0, 0, 1, 1], [], []>} : vector<32x32xf32>, vector<32x2xf32>, vector<32x2xf32> -> vector<32x2xf32>
    %83 = arith.addf %81, %82 : vector<32x2xf32>
    %84 = math.tanh %83 : vector<32x2xf32>
    %c0_46 = arith.constant 0 : index
    %c12 = arith.constant 12 : index
    %85 = vector.load %arg15[%c0_46, %c12] : memref<32x16xf32, #tpu.memory_space<vmem>>, vector<32x2xf32>
    tpu.vector_store %arg15[%c0_46, %c12], %84 {strides = array<i32>} : memref<32x16xf32, #tpu.memory_space<vmem>>, vector<32x2xf32>,
    %86 = vector.extract_strided_slice %51 {offsets = [0, 14], sizes = [32, 2], strides = [1, 1]} : vector<32x16xf32> to vector<32x2xf32>
    %cst_47 = arith.constant dense<0.000000e+00> : vector<32x2xf32>
    %87 = tpu.matmul %52, %84, %cst_47 {dimension_numbers = #tpu.dot_dimension_numbers<[1], [0], [0], [1], [0, 0, 1, 1], [], []>} : vector<32x32xf32>, vector<32x2xf32>, vector<32x2xf32> -> vector<32x2xf32>
    %88 = arith.addf %86, %87 : vector<32x2xf32>
    %89 = math.tanh %88 : vector<32x2xf32>
    %c0_48 = arith.constant 0 : index
    %c14 = arith.constant 14 : index
    %90 = vector.load %arg15[%c0_48, %c14] : memref<32x16xf32, #tpu.memory_space<vmem>>, vector<32x2xf32>
    tpu.vector_store %arg15[%c0_48, %c14], %89 {strides = array<i32>} : memref<32x16xf32, #tpu.memory_space<vmem>>, vector<32x2xf32>,
    %c0_49 = arith.constant 0 : index
    %c0_50 = arith.constant 0 : index
    %91 = vector.load %arg9[%c0_49, %c0_50] : memref<16x32xf32, #tpu.memory_space<vmem>>, vector<16x32xf32>
    %c0_51 = arith.constant 0 : index
    %c0_52 = arith.constant 0 : index
    %92 = vector.load %arg15[%c0_51, %c0_52] : memref<32x16xf32, #tpu.memory_space<vmem>>, vector<32x16xf32>
    %cst_53 = arith.constant dense<0.000000e+00> : vector<16x16xf32>
    %93 = tpu.matmul %91, %92, %cst_53 {dimension_numbers = #tpu.dot_dimension_numbers<[1], [0], [0], [1], [0, 0, 1, 1], [], []>} : vector<16x32xf32>, vector<32x16xf32>, vector<16x16xf32> -> vector<16x16xf32>
    %c0_54 = arith.constant 0 : index
    %c0_55 = arith.constant 0 : index
    %94 = vector.load %arg10[%c0_54, %c0_55] : memref<16x1xf32, #tpu.memory_space<vmem>>, vector<16x1xf32>
    %95 = vector.broadcast %94 : vector<16x1xf32> to vector<16x16xf32>
    %96 = arith.addf %93, %95 : vector<16x16xf32>
    %cst_56 = arith.constant 0.000000e+00 : f32
    %97 = vector.broadcast %cst_56 : f32 to vector<16x16xf32>
    %98 = arith.maximumf %96, %97 : vector<16x16xf32>
    %c0_57 = arith.constant 0 : index
    %c0_58 = arith.constant 0 : index
    %99 = vector.load %arg11[%c0_57, %c0_58] : memref<6x16xf32, #tpu.memory_space<vmem>>, vector<6x16xf32>
    %cst_59 = arith.constant dense<0.000000e+00> : vector<6x16xf32>
    %100 = tpu.matmul %99, %98, %cst_59 {dimension_numbers = #tpu.dot_dimension_numbers<[1], [0], [0], [1], [0, 0, 1, 1], [], []>} : vector<6x16xf32>, vector<16x16xf32>, vector<6x16xf32> -> vector<6x16xf32>
    %c0_60 = arith.constant 0 : index
    %c0_61 = arith.constant 0 : index
    %101 = vector.load %arg12[%c0_60, %c0_61] : memref<6x1xf32, #tpu.memory_space<vmem>>, vector<6x1xf32>
    %102 = vector.broadcast %101 : vector<6x1xf32> to vector<6x16xf32>
    %103 = arith.addf %100, %102 : vector<6x16xf32>
    %c0_62 = arith.constant 0 : index
    %c0_63 = arith.constant 0 : index
    %104 = vector.load %arg13[%c0_62, %c0_63] : memref<6x16xf32, #tpu.memory_space<vmem>>, vector<6x16xf32>
    tpu.vector_store %arg13[%c0_62, %c0_63], %103 {strides = array<i32>} : memref<6x16xf32, #tpu.memory_space<vmem>>, vector<6x16xf32>,
    return
  }
}

</mosaic_0001>

<llo_original>
// kernel: citybike_forward.1
$region0: #{citybike_forward.1}
  #allocation0 [shape = 'u32[]', space=smem, size = 0x4, offset = 0x4, fixed_abs, tag = 'smem constant byte address 0x4 - core index']
  #allocation1 [shape = 'u32[72,128]{1,0:T(1,128)}', space=vmem, size = 0x9000, scoped, tag = 'internal scratch']
  #allocation2 [shape = 'f32[32,16]{1,0:T(8,128)}', space=vmem, size = 0x4000, scoped, tag = 'scratch operand']
  #allocation3 [shape = 'f32[32,16]{1,0:T(8,128)}', space=vmem, size = 0x4000, scoped, tag = 'scratch operand']
  %s0 = inlined_call_operand.vmem [shape: f32[6,64], index: 0, kind: input, shape index: {}]
  %s1 = inlined_call_operand.vmem [shape: f32[6,6], index: 1, kind: input, shape index: {}]
  %s2 = inlined_call_operand.vmem [shape: f32[64,128], index: 2, kind: input, shape index: {}]
  %s3 = inlined_call_operand.vmem [shape: f32[1,128], index: 3, kind: input, shape index: {}]
  %s4 = inlined_call_operand.vmem [shape: f32[128,64], index: 4, kind: input, shape index: {}]
  %s5 = inlined_call_operand.vmem [shape: f32[1,64], index: 5, kind: input, shape index: {}]
  %s6 = inlined_call_operand.vmem [shape: f32[32,32], index: 6, kind: input, shape index: {}]
  %s7 = inlined_call_operand.vmem [shape: f32[32,1], index: 7, kind: input, shape index: {}]
  %s8 = inlined_call_operand.vmem [shape: f32[32,32], index: 8, kind: input, shape index: {}]
  %s9 = inlined_call_operand.vmem [shape: f32[16,32], index: 9, kind: input, shape index: {}]
  %s10 = inlined_call_operand.vmem [shape: f32[16,1], index: 10, kind: input, shape index: {}]
  %s11 = inlined_call_operand.vmem [shape: f32[6,16], index: 11, kind: input, shape index: {}]
  %s12 = inlined_call_operand.vmem [shape: f32[6,1], index: 12, kind: input, shape index: {}]
  %s13 = inlined_call_operand.vmem [shape: f32[6,16], index: 13, kind: output, shape index: {}]
  %s14 = sld [smem:[#allocation0]]
  $region62: #{citybike_forward.1} parent=0
    _
  %s16 = ssub.s32 1, %s14
  %s17 = scalar_select 0, %s16, %s14
  // Predicated region
  $region2: #{citybike_forward.1} parent=0 // pred_check
    _
  $region3: #{citybike_forward.1} parent=0 // pred_check_branch
    %19 = sbr.rel (0) target = $region5
  $region4: #{citybike_forward.1} parent=0 // pred_region
    _
  $region5: #{citybike_forward.1} parent=0 // pred_fallthru
    _
  // Predicated region
  $region6: #{citybike_forward.1} parent=0 // pred_check
    _
  $region7: #{citybike_forward.1} parent=0 // pred_check_branch
    %21 = sbr.rel (0) target = $region9
  $region8: #{citybike_forward.1} parent=0 // pred_region
    _
  $region9: #{citybike_forward.1} parent=0 // pred_fallthru
    _
  // Predicated region
  $region10: #{citybike_forward.1} parent=0 // pred_check
    _
  $region11: #{citybike_forward.1} parent=0 // pred_check_branch
    %23 = sbr.rel (0) target = $region13
  $region12: #{citybike_forward.1} parent=0 // pred_region
    _
  $region13: #{citybike_forward.1} parent=0 // pred_fallthru
    _
  // Predicated region
  $region14: #{citybike_forward.1} parent=0 // pred_check
    _
  $region15: #{citybike_forward.1} parent=0 // pred_check_branch
    %25 = sbr.rel (0) target = $region17
  $region16: #{citybike_forward.1} parent=0 // pred_region
    _
  $region17: #{citybike_forward.1} parent=0 // pred_fallthru
    _
  // Predicated region
  $region18: #{citybike_forward.1} parent=0 // pred_check
    _
  $region19: #{citybike_forward.1} parent=0 // pred_check_branch
    %27 = sbr.rel (0) target = $region21
  $region20: #{citybike_forward.1} parent=0 // pred_region
    _
  $region21: #{citybike_forward.1} parent=0 // pred_fallthru
    _
  // Predicated region
  $region22: #{citybike_forward.1} parent=0 // pred_check
    _
  $region23: #{citybike_forward.1} parent=0 // pred_check_branch
    %29 = sbr.rel (0) target = $region25
  $region24: #{citybike_forward.1} parent=0 // pred_region
    _
  $region25: #{citybike_forward.1} parent=0 // pred_fallthru
    _
  // Predicated region
  $region26: #{citybike_forward.1} parent=0 // pred_check
    _
  $region27: #{citybike_forward.1} parent=0 // pred_check_branch
    %31 = sbr.rel (0) target = $region29
  $region28: #{citybike_forward.1} parent=0 // pred_region
    _
  $region29: #{citybike_forward.1} parent=0 // pred_fallthru
    _
  // Predicated region
  $region30: #{citybike_forward.1} parent=0 // pred_check
    _
  $region31: #{citybike_forward.1} parent=0 // pred_check_branch
    %33 = sbr.rel (0) target = $region33
  $region32: #{citybike_forward.1} parent=0 // pred_region
    _
  $region33: #{citybike_forward.1} parent=0 // pred_fallthru
    _
  // Predicated region
  $region34: #{citybike_forward.1} parent=0 // pred_check
    _
  $region35: #{citybike_forward.1} parent=0 // pred_check_branch
    %35 = sbr.rel (0) target = $region37
  $region36: #{citybike_forward.1} parent=0 // pred_region
    _
  $region37: #{citybike_forward.1} parent=0 // pred_fallthru
    _
  // Predicated region
  $region38: #{citybike_forward.1} parent=0 // pred_check
    _
  $region39: #{citybike_forward.1} parent=0 // pred_check_branch
    %37 = sbr.rel (0) target = $region41
  $region40: #{citybike_forward.1} parent=0 // pred_region
    _
  $region41: #{citybike_forward.1} parent=0 // pred_fallthru
    _
  // Predicated region
  $region42: #{citybike_forward.1} parent=0 // pred_check
    _
  $region43: #{citybike_forward.1} parent=0 // pred_check_branch
    %39 = sbr.rel (0) target = $region45
  $region44: #{citybike_forward.1} parent=0 // pred_region
    _
  $region45: #{citybike_forward.1} parent=0 // pred_fallthru
    _
  // Predicated region
  $region46: #{citybike_forward.1} parent=0 // pred_check
    _
  $region47: #{citybike_forward.1} parent=0 // pred_check_branch
    %41 = sbr.rel (0) target = $region49
  $region48: #{citybike_forward.1} parent=0 // pred_region
    _
  $region49: #{citybike_forward.1} parent=0 // pred_fallthru
    _
  // Predicated region
  $region50: #{citybike_forward.1} parent=0 // pred_check
    _
  $region51: #{citybike_forward.1} parent=0 // pred_check_branch
    %43 = sbr.rel (0) target = $region53
  $region52: #{citybike_forward.1} parent=0 // pred_region
    _
  $region53: #{citybike_forward.1} parent=0 // pred_fallthru
    _
  %v44 = vld [vmem:[%s1] sm:$0x3f]
  %v45 = vld [vmem:[%s0] sm:$0x3f]
  %v46 = vld [vmem:[%s2] sm:$0xff]
  %v47 = vld [vmem:[%s2 + $0x8] sm:$0xff]
  %v48 = vld [vmem:[%s2 + $0x10] sm:$0xff]
  %v49 = vld [vmem:[%s2 + $0x18] sm:$0xff]
  %v50 = vld [vmem:[%s2 + $0x20] sm:$0xff]
  %v51 = vld [vmem:[%s2 + $0x28] sm:$0xff]
  %v52 = vld [vmem:[%s2 + $0x30] sm:$0xff]
  %v53 = vld [vmem:[%s2 + $0x38] sm:$0xff]
  %vm54 = vcmask 523264
  %v56 = vsel %vm54, %v45, 0
  %58 = vmatpush.msra.mxu0 0.0
  %59 = vmatpush.msra.mxu0 0.0
  %60 = vmatpush.msra.mxu0 0.0
  %61 = vmatpush.msra.mxu0 0.0
  %62 = vmatpush.msra.mxu0 0.0
  %63 = vmatpush.msra.mxu0 0.0
  %64 = vmatpush.msra.mxu0 0.0
  %65 = vmatpush.msra.mxu0 0.0
  %66 = vmatpush.msra.mxu0 %v53
  %67 = vmatpush.msra.mxu0 %v52
  %68 = vmatpush.msra.mxu0 %v51
  %69 = vmatpush.msra.mxu0 %v50
  %70 = vmatpush.msra.mxu0 %v49
  %71 = vmatpush.msra.mxu0 %v48
  %72 = vmatpush.msra.mxu0 %v47
  %73 = vmatpush.msra.mxu0 %v46
  %74 = vmatmul.f32.gmra.mxu0 %v56
  %v75 = vpop.f32.mrf.mxu0
  %v76 = vadd.f32 0.0, %v75
  %77 = vdwg.mxu0
  %v78 = vld [vmem:[%s3] sm:$0x1]
  %v80 = vperm.slane %v78, 0
  %vm82 = vcmask 48128
  %v84 = vsel %vm82, %v44, 0
  %vm86 = vcmask 1045504
  %v88 = vsel %vm86, %v76, 0
  %90 = vmatpush.msra.mxu0 0.0
  %91 = vmatpush.msra.mxu0 0.0
  %92 = vmatpush.msra.mxu0 0.0
  %93 = vmatpush.msra.mxu0 0.0
  %94 = vmatpush.msra.mxu0 0.0
  %95 = vmatpush.msra.mxu0 0.0
  %96 = vmatpush.msra.mxu0 0.0
  %97 = vmatpush.msra.mxu0 0.0
  %98 = vmatpush.msra.mxu0 0.0
  %99 = vmatpush.msra.mxu0 0.0
  %100 = vmatpush.msra.mxu0 0.0
  %101 = vmatpush.msra.mxu0 0.0
  %102 = vmatpush.msra.mxu0 0.0
  %103 = vmatpush.msra.mxu0 0.0
  %104 = vmatpush.msra.mxu0 0.0
  %105 = vmatpush.msra.mxu0 %v88
  %106 = vmatmul.f32.gmra.mxu0 %v84
  %v107 = vpop.f32.mrf.mxu0
  %v108 = vadd.f32 %v80, %v107
  %109 = vdwg.mxu0
  %v110 = vmax.f32 %v108, 0.0
  %v111 = vld [vmem:[%s4] sm:$0xff]
  %v112 = vld [vmem:[%s4 + $0x8] sm:$0xff]
  %v113 = vld [vmem:[%s4 + $0x10] sm:$0xff]
  %v114 = vld [vmem:[%s4 + $0x18] sm:$0xff]
  %v115 = vld [vmem:[%s4 + $0x20] sm:$0xff]
  %v116 = vld [vmem:[%s4 + $0x28] sm:$0xff]
  %v117 = vld [vmem:[%s4 + $0x30] sm:$0xff]
  %v118 = vld [vmem:[%s4 + $0x38] sm:$0xff]
  %v119 = vld [vmem:[%s4 + $0x40] sm:$0xff]
  %v120 = vld [vmem:[%s4 + $0x48] sm:$0xff]
  %v121 = vld [vmem:[%s4 + $0x50] sm:$0xff]
  %v122 = vld [vmem:[%s4 + $0x58] sm:$0xff]
  %v123 = vld [vmem:[%s4 + $0x60] sm:$0xff]
  %v124 = vld [vmem:[%s4 + $0x68] sm:$0xff]
  %v125 = vld [vmem:[%s4 + $0x70] sm:$0xff]
  %v126 = vld [vmem:[%s4 + $0x78] sm:$0xff]
  %127 = vmatpush.msra.mxu0 %v126
  %128 = vmatpush.msra.mxu0 %v125
  %129 = vmatpush.msra.mxu0 %v124
  %130 = vmatpush.msra.mxu0 %v123
  %131 = vmatpush.msra.mxu0 %v122
  %132 = vmatpush.msra.mxu0 %v121
  %133 = vmatpush.msra.mxu0 %v120
  %134 = vmatpush.msra.mxu0 %v119
  %135 = vmatpush.msra.mxu0 %v118
  %136 = vmatpush.msra.mxu0 %v117
  %137 = vmatpush.msra.mxu0 %v116
  %138 = vmatpush.msra.mxu0 %v115
  %139 = vmatpush.msra.mxu0 %v114
  %140 = vmatpush.msra.mxu0 %v113
  %141 = vmatpush.msra.mxu0 %v112
  %142 = vmatpush.msra.mxu0 %v111
  %143 = vmatmul.f32.gmra.mxu0 %v110
  %v144 = vpop.f32.mrf.mxu0
  %v145 = vadd.f32 0.0, %v144
  %146 = vdwg.mxu0
  %v147 = vld [vmem:[%s5] sm:$0x1]
  %v149 = vperm.slane %v147, 0
  %v152 = vsel %vm86, %v145, 0
  %154 = vmatpush.msra.mxu0 0.0
  %155 = vmatpush.msra.mxu0 0.0
  %156 = vmatpush.msra.mxu0 0.0
  %157 = vmatpush.msra.mxu0 0.0
  %158 = vmatpush.msra.mxu0 0.0
  %159 = vmatpush.msra.mxu0 0.0
  %160 = vmatpush.msra.mxu0 0.0
  %161 = vmatpush.msra.mxu0 0.0
  %162 = vmatpush.msra.mxu0 0.0
  %163 = vmatpush.msra.mxu0 0.0
  %164 = vmatpush.msra.mxu0 0.0
  %165 = vmatpush.msra.mxu0 0.0
  %166 = vmatpush.msra.mxu0 0.0
  %167 = vmatpush.msra.mxu0 0.0
  %168 = vmatpush.msra.mxu0 0.0
  %169 = vmatpush.msra.mxu0 %v152
  %170 = vmatmul.f32.gmra.mxu0 %v84
  %v171 = vpop.f32.mrf.mxu0
  %v172 = vadd.f32 %v149, %v171
  %173 = vdwg.mxu0
  %175 = vrot.lane.b32.xlu0 %v172, 112
  %v176 = vpop.permute.xlu0 %175
  %v178 = vmax.f32 %v172, %v176
  %179 = vrot.lane.b32.xlu0 %v172, 96
  %v180 = vpop.permute.xlu0 %179
  %v182 = vmax.f32 %v178, %v180
  %183 = vrot.lane.b32.xlu0 %v172, 80
  %v184 = vpop.permute.xlu0 %183
  %v186 = vmax.f32 %v182, %v184
  %v187 = vsub.f32 %v172, %v186
  %v188 = vmul.f32 %v187, 1.442695
  %v189 = vpow.pop %v188
  %191 = vrot.lane.b32.xlu0 %v186, 16
  %v192 = vpop.permute.xlu0 %191
  %v194 = vsub.f32 %v172, %v192
  %v195 = vmul.f32 %v194, 1.442695
  %v196 = vpow.pop %v195
  %198 = vrot.lane.b32.xlu0 %v196, 112
  %v199 = vpop.permute.xlu0 %198
  %v201 = vadd.f32 %v189, %v199
  %202 = vrot.lane.b32.xlu0 %v186, 32
  %v203 = vpop.permute.xlu0 %202
  %v205 = vsub.f32 %v172, %v203
  %v206 = vmul.f32 %v205, 1.442695
  %v207 = vpow.pop %v206
  %209 = vrot.lane.b32.xlu0 %v207, 96
  %v210 = vpop.permute.xlu0 %209
  %v212 = vadd.f32 %v201, %v210
  %213 = vrot.lane.b32.xlu0 %v186, 48
  %v214 = vpop.permute.xlu0 %213
  %v216 = vsub.f32 %v172, %v214
  %v217 = vmul.f32 %v216, 1.442695
  %v218 = vpow.pop %v217
  %220 = vrot.lane.b32.xlu0 %v218, 80
  %v221 = vpop.permute.xlu0 %220
  %v223 = vadd.f32 %v212, %v221
  %v224 = vlog2.pop %v223
  %v225 = vmul.f32 %v224, 0.6931472
  %v226 = vadd.f32 %v186, %v225
  %vm227 = vcmask 130048
  %228 = vst.msk [vmem:[#allocation2] sm:$0xff] %vm227, 0.0
  %229 = vst.msk [vmem:[#allocation2 + $0x8] sm:$0xff] %vm227, 0.0
  %230 = vst.msk [vmem:[#allocation2 + $0x10] sm:$0xff] %vm227, 0.0
  %231 = vst.msk [vmem:[#allocation2 + $0x18] sm:$0xff] %vm227, 0.0
  %v232 = vsub.f32 %v172, %v226
  %vm233 = vcmask 128000
  %234 = vst.msk [vmem:[#allocation2] sm:$0x3f] %vm233, %v232
  %236 = vrot.lane.b32.xlu0 %v226, 16
  %v237 = vpop.permute.xlu0 %236
  %v239 = vsub.f32 %v172, %v237
  %241 = vrot.lane.b32.xlu0 %v239, 112
  %v242 = vpop.permute.xlu0 %241
  %244 = vst.msk [vmem:[#allocation2 + $0x8] sm:$0x3f] %vm233, %v242
  %245 = vrot.lane.b32.xlu0 %v226, 32
  %v246 = vpop.permute.xlu0 %245
  %v248 = vsub.f32 %v172, %v246
  %250 = vrot.lane.b32.xlu0 %v248, 96
  %v251 = vpop.permute.xlu0 %250
  %253 = vst.msk [vmem:[#allocation2 + $0x10] sm:$0x3f] %vm233, %v251
  %254 = vrot.lane.b32.xlu0 %v226, 48
  %v255 = vpop.permute.xlu0 %254
  %v257 = vsub.f32 %v172, %v255
  %259 = vrot.lane.b32.xlu0 %v257, 80
  %v260 = vpop.permute.xlu0 %259
  %262 = vst.msk [vmem:[#allocation2 + $0x18] sm:$0x3f] %vm233, %v260
  %v263 = vld [vmem:[%s6] sm:$0xff]
  %v264 = vld [vmem:[%s6 + $0x8] sm:$0xff]
  %v265 = vld [vmem:[%s6 + $0x10] sm:$0xff]
  %v266 = vld [vmem:[%s6 + $0x18] sm:$0xff]
  %v267 = vld [vmem:[#allocation2] sm:$0xff]
  %v268 = vld [vmem:[#allocation2 + $0x8] sm:$0xff]
  %v269 = vld [vmem:[#allocation2 + $0x10] sm:$0xff]
  %v270 = vld [vmem:[#allocation2 + $0x18] sm:$0xff]
  %v271 = vld [vmem:[%s7] sm:$0xff]
  %v272 = vld [vmem:[%s7 + $0x8] sm:$0xff]
  %v273 = vld [vmem:[%s7 + $0x10] sm:$0xff]
  %v274 = vld [vmem:[%s7 + $0x18] sm:$0xff]
  %276 = vset.pattern.permute.xlu0 0
  %277 = vperm.xlu0 %276, %v271
  %v278 = vpop.permute.xlu0 %277
  %281 = vset.pattern.permute.xlu0 0
  %282 = vperm.xlu0 %281, %v272
  %v283 = vpop.permute.xlu0 %282
  %286 = vset.pattern.permute.xlu0 0
  %287 = vperm.xlu0 %286, %v273
  %v288 = vpop.permute.xlu0 %287
  %291 = vset.pattern.permute.xlu0 0
  %292 = vperm.xlu0 %291, %v274
  %v293 = vpop.permute.xlu0 %292
  %vm295 = vcmask 261120
  %v297 = vsel %vm295, %v263, 0
  %v300 = vsel %vm295, %v264, 0
  %v303 = vsel %vm295, %v265, 0
  %v306 = vsel %vm295, %v266, 0
  %308 = vmatpush.msra.mxu0 0.0
  %309 = vmatpush.msra.mxu0 0.0
  %310 = vmatpush.msra.mxu0 0.0
  %311 = vmatpush.msra.mxu0 0.0
  %312 = vmatpush.msra.mxu0 0.0
  %313 = vmatpush.msra.mxu0 0.0
  %314 = vmatpush.msra.mxu0 0.0
  %315 = vmatpush.msra.mxu0 0.0
  %316 = vmatpush.msra.mxu0 0.0
  %317 = vmatpush.msra.mxu0 0.0
  %318 = vmatpush.msra.mxu0 0.0
  %319 = vmatpush.msra.mxu0 0.0
  %320 = vmatpush.msra.mxu0 %v270
  %321 = vmatpush.msra.mxu0 %v269
  %322 = vmatpush.msra.mxu0 %v268
  %323 = vmatpush.msra.mxu0 %v267
  %324 = vmatmul.f32.gmra.mxu0 %v297
  %v325 = vpop.f32.mrf.mxu0
  %v326 = vadd.f32 %v278, %v325
  %327 = vmatmul.f32.gmra.mxu0 %v300
  %v328 = vpop.f32.mrf.mxu0
  %v329 = vadd.f32 %v283, %v328
  %330 = vmatmul.f32.gmra.mxu0 %v303
  %v331 = vpop.f32.mrf.mxu0
  %v332 = vadd.f32 %v288, %v331
  %333 = vmatmul.f32.gmra.mxu0 %v306
  %v334 = vpop.f32.mrf.mxu0
  %v335 = vadd.f32 %v293, %v334
  %336 = vdwg.mxu0
  %v337 = vld [vmem:[%s8] sm:$0xff]
  %v338 = vld [vmem:[%s8 + $0x8] sm:$0xff]
  %v339 = vld [vmem:[%s8 + $0x10] sm:$0xff]
  %v340 = vld [vmem:[%s8 + $0x18] sm:$0xff]
  %v341 = vtanh.pop %v326
  %v342 = vtanh.pop %v329
  %v343 = vtanh.pop %v332
  %v344 = vtanh.pop %v335
  %vm345 = vcmask 15360
  %346 = vst.msk [vmem:[#allocation3] sm:$0xff] %vm345, %v341
  %347 = vst.msk [vmem:[#allocation3 + $0x8] sm:$0xff] %vm345, %v342
  %348 = vst.msk [vmem:[#allocation3 + $0x10] sm:$0xff] %vm345, %v343
  %349 = vst.msk [vmem:[#allocation3 + $0x18] sm:$0xff] %vm345, %v344
  %v351 = vsel %vm295, %v337, 0
  %v354 = vsel %vm295, %v338, 0
  %v357 = vsel %vm295, %v339, 0
  %v360 = vsel %vm295, %v340, 0
  %362 = vmatpush.msra.mxu0 0.0
  %363 = vmatpush.msra.mxu0 0.0
  %364 = vmatpush.msra.mxu0 0.0
  %365 = vmatpush.msra.mxu0 0.0
  %366 = vmatpush.msra.mxu0 0.0
  %367 = vmatpush.msra.mxu0 0.0
  %368 = vmatpush.msra.mxu0 0.0
  %369 = vmatpush.msra.mxu0 0.0
  %370 = vmatpush.msra.mxu0 0.0
  %371 = vmatpush.msra.mxu0 0.0
  %372 = vmatpush.msra.mxu0 0.0
  %373 = vmatpush.msra.mxu0 0.0
  %374 = vmatpush.msra.mxu0 %v344
  %375 = vmatpush.msra.mxu0 %v343
  %376 = vmatpush.msra.mxu0 %v342
  %377 = vmatpush.msra.mxu0 %v341
  %378 = vmatmul.f32.gmra.mxu0 %v351
  %v379 = vpop.f32.mrf.mxu0
  %v380 = vadd.f32 0.0, %v379
  %381 = vmatmul.f32.gmra.mxu0 %v354
  %v382 = vpop.f32.mrf.mxu0
  %v383 = vadd.f32 0.0, %v382
  %384 = vmatmul.f32.gmra.mxu0 %v357
  %v385 = vpop.f32.mrf.mxu0
  %v386 = vadd.f32 0.0, %v385
  %387 = vmatmul.f32.gmra.mxu0 %v360
  %v388 = vpop.f32.mrf.mxu0
  %v389 = vadd.f32 0.0, %v388
  %390 = vdwg.mxu0
  %395 = vrot.lane.b32.xlu0 %v380, 2
  %v396 = vpop.permute.xlu0 %395
  %397 = vrot.lane.b32.xlu0 %v383, 2
  %v398 = vpop.permute.xlu0 %397
  %399 = vrot.lane.b32.xlu0 %v386, 2
  %v400 = vpop.permute.xlu0 %399
  %401 = vrot.lane.b32.xlu0 %v389, 2
  %v402 = vpop.permute.xlu0 %401
  %v407 = vadd.f32 %v326, %v396
  %v408 = vadd.f32 %v329, %v398
  %v409 = vadd.f32 %v332, %v400
  %v410 = vadd.f32 %v335, %v402
  %v411 = vtanh.pop %v407
  %v412 = vtanh.pop %v408
  %v413 = vtanh.pop %v409
  %v414 = vtanh.pop %v410
  %vm415 = vcmask 31760
  %416 = vst.msk [vmem:[#allocation3] sm:$0xff] %vm415, %v411
  %417 = vst.msk [vmem:[#allocation3 + $0x8] sm:$0xff] %vm415, %v412
  %418 = vst.msk [vmem:[#allocation3 + $0x10] sm:$0xff] %vm415, %v413
  %419 = vst.msk [vmem:[#allocation3 + $0x18] sm:$0xff] %vm415, %v414
  %424 = vrot.lane.b32.xlu0 %v411, 126
  %v425 = vpop.permute.xlu0 %424
  %426 = vrot.lane.b32.xlu0 %v412, 126
  %v427 = vpop.permute.xlu0 %426
  %428 = vrot.lane.b32.xlu0 %v413, 126
  %v429 = vpop.permute.xlu0 %428
  %430 = vrot.lane.b32.xlu0 %v414, 126
  %v431 = vpop.permute.xlu0 %430
  %436 = vmatpush.msra.mxu0 0.0
  %437 = vmatpush.msra.mxu0 0.0
  %438 = vmatpush.msra.mxu0 0.0
  %439 = vmatpush.msra.mxu0 0.0
  %440 = vmatpush.msra.mxu0 0.0
  %441 = vmatpush.msra.mxu0 0.0
  %442 = vmatpush.msra.mxu0 0.0
  %443 = vmatpush.msra.mxu0 0.0
  %444 = vmatpush.msra.mxu0 0.0
  %445 = vmatpush.msra.mxu0 0.0
  %446 = vmatpush.msra.mxu0 0.0
  %447 = vmatpush.msra.mxu0 0.0
  %448 = vmatpush.msra.mxu0 %v431
  %449 = vmatpush.msra.mxu0 %v429
  %450 = vmatpush.msra.mxu0 %v427
  %451 = vmatpush.msra.mxu0 %v425
  %452 = vmatmul.f32.gmra.mxu0 %v351
  %v453 = vpop.f32.mrf.mxu0
  %v454 = vadd.f32 0.0, %v453
  %455 = vmatmul.f32.gmra.mxu0 %v354
  %v456 = vpop.f32.mrf.mxu0
  %v457 = vadd.f32 0.0, %v456
  %458 = vmatmul.f32.gmra.mxu0 %v357
  %v459 = vpop.f32.mrf.mxu0
  %v460 = vadd.f32 0.0, %v459
  %461 = vmatmul.f32.gmra.mxu0 %v360
  %v462 = vpop.f32.mrf.mxu0
  %v463 = vadd.f32 0.0, %v462
  %464 = vdwg.mxu0
  %469 = vrot.lane.b32.xlu0 %v454, 4
  %v470 = vpop.permute.xlu0 %469
  %471 = vrot.lane.b32.xlu0 %v457, 4
  %v472 = vpop.permute.xlu0 %471
  %473 = vrot.lane.b32.xlu0 %v460, 4
  %v474 = vpop.permute.xlu0 %473
  %475 = vrot.lane.b32.xlu0 %v463, 4
  %v476 = vpop.permute.xlu0 %475
  %v481 = vadd.f32 %v326, %v470
  %v482 = vadd.f32 %v329, %v472
  %v483 = vadd.f32 %v332, %v474
  %v484 = vadd.f32 %v335, %v476
  %v485 = vtanh.pop %v481
  %v486 = vtanh.pop %v482
  %v487 = vtanh.pop %v483
  %v488 = vtanh.pop %v484
  %vm489 = vcmask 48160
  %490 = vst.msk [vmem:[#allocation3] sm:$0xff] %vm489, %v485
  %491 = vst.msk [vmem:[#allocation3 + $0x8] sm:$0xff] %vm489, %v486
  %492 = vst.msk [vmem:[#allocation3 + $0x10] sm:$0xff] %vm489, %v487
  %493 = vst.msk [vmem:[#allocation3 + $0x18] sm:$0xff] %vm489, %v488
  %498 = vrot.lane.b32.xlu0 %v485, 124
  %v499 = vpop.permute.xlu0 %498
  %500 = vrot.lane.b32.xlu0 %v486, 124
  %v501 = vpop.permute.xlu0 %500
  %502 = vrot.lane.b32.xlu0 %v487, 124
  %v503 = vpop.permute.xlu0 %502
  %504 = vrot.lane.b32.xlu0 %v488, 124
  %v505 = vpop.permute.xlu0 %504
  %510 = vmatpush.msra.mxu0 0.0
  %511 = vmatpush.msra.mxu0 0.0
  %512 = vmatpush.msra.mxu0 0.0
  %513 = vmatpush.msra.mxu0 0.0
  %514 = vmatpush.msra.mxu0 0.0
  %515 = vmatpush.msra.mxu0 0.0
  %516 = vmatpush.msra.mxu0 0.0
  %517 = vmatpush.msra.mxu0 0.0
  %518 = vmatpush.msra.mxu0 0.0
  %519 = vmatpush.msra.mxu0 0.0
  %520 = vmatpush.msra.mxu0 0.0
  %521 = vmatpush.msra.mxu0 0.0
  %522 = vmatpush.msra.mxu0 %v505
  %523 = vmatpush.msra.mxu0 %v503
  %524 = vmatpush.msra.mxu0 %v501
  %525 = vmatpush.msra.mxu0 %v499
  %526 = vmatmul.f32.gmra.mxu0 %v351
  %v527 = vpop.f32.mrf.mxu0
  %v528 = vadd.f32 0.0, %v527
  %529 = vmatmul.f32.gmra.mxu0 %v354
  %v530 = vpop.f32.mrf.mxu0
  %v531 = vadd.f32 0.0, %v530
  %532 = vmatmul.f32.gmra.mxu0 %v357
  %v533 = vpop.f32.mrf.mxu0
  %v534 = vadd.f32 0.0, %v533
  %535 = vmatmul.f32.gmra.mxu0 %v360
  %v536 = vpop.f32.mrf.mxu0
  %v537 = vadd.f32 0.0, %v536
  %538 = vdwg.mxu0
  %543 = vrot.lane.b32.xlu0 %v528, 6
  %v544 = vpop.permute.xlu0 %543
  %545 = vrot.lane.b32.xlu0 %v531, 6
  %v546 = vpop.permute.xlu0 %545
  %547 = vrot.lane.b32.xlu0 %v534, 6
  %v548 = vpop.permute.xlu0 %547
  %549 = vrot.lane.b32.xlu0 %v537, 6
  %v550 = vpop.permute.xlu0 %549
  %v555 = vadd.f32 %v326, %v544
  %v556 = vadd.f32 %v329, %v546
  %v557 = vadd.f32 %v332, %v548
  %v558 = vadd.f32 %v335, %v550
  %v559 = vtanh.pop %v555
  %v560 = vtanh.pop %v556
  %v561 = vtanh.pop %v557
  %v562 = vtanh.pop %v558
  %vm563 = vcmask 64560
  %564 = vst.msk [vmem:[#allocation3] sm:$0xff] %vm563, %v559
  %565 = vst.msk [vmem:[#allocation3 + $0x8] sm:$0xff] %vm563, %v560
  %566 = vst.msk [vmem:[#allocation3 + $0x10] sm:$0xff] %vm563, %v561
  %567 = vst.msk [vmem:[#allocation3 + $0x18] sm:$0xff] %vm563, %v562
  %572 = vrot.lane.b32.xlu0 %v559, 122
  %v573 = vpop.permute.xlu0 %572
  %574 = vrot.lane.b32.xlu0 %v560, 122
  %v575 = vpop.permute.xlu0 %574
  %576 = vrot.lane.b32.xlu0 %v561, 122
  %v577 = vpop.permute.xlu0 %576
  %578 = vrot.lane.b32.xlu0 %v562, 122
  %v579 = vpop.permute.xlu0 %578
  %584 = vmatpush.msra.mxu0 0.0
  %585 = vmatpush.msra.mxu0 0.0
  %586 = vmatpush.msra.mxu0 0.0
  %587 = vmatpush.msra.mxu0 0.0
  %588 = vmatpush.msra.mxu0 0.0
  %589 = vmatpush.msra.mxu0 0.0
  %590 = vmatpush.msra.mxu0 0.0
  %591 = vmatpush.msra.mxu0 0.0
  %592 = vmatpush.msra.mxu0 0.0
  %593 = vmatpush.msra.mxu0 0.0
  %594 = vmatpush.msra.mxu0 0.0
  %595 = vmatpush.msra.mxu0 0.0
  %596 = vmatpush.msra.mxu0 %v579
  %597 = vmatpush.msra.mxu0 %v577
  %598 = vmatpush.msra.mxu0 %v575
  %599 = vmatpush.msra.mxu0 %v573
  %600 = vmatmul.f32.gmra.mxu0 %v351
  %v601 = vpop.f32.mrf.mxu0
  %v602 = vadd.f32 0.0, %v601
  %603 = vmatmul.f32.gmra.mxu0 %v354
  %v604 = vpop.f32.mrf.mxu0
  %v605 = vadd.f32 0.0, %v604
  %606 = vmatmul.f32.gmra.mxu0 %v357
  %v607 = vpop.f32.mrf.mxu0
  %v608 = vadd.f32 0.0, %v607
  %609 = vmatmul.f32.gmra.mxu0 %v360
  %v610 = vpop.f32.mrf.mxu0
  %v611 = vadd.f32 0.0, %v610
  %612 = vdwg.mxu0
  %617 = vrot.lane.b32.xlu0 %v602, 8
  %v618 = vpop.permute.xlu0 %617
  %619 = vrot.lane.b32.xlu0 %v605, 8
  %v620 = vpop.permute.xlu0 %619
  %621 = vrot.lane.b32.xlu0 %v608, 8
  %v622 = vpop.permute.xlu0 %621
  %623 = vrot.lane.b32.xlu0 %v611, 8
  %v624 = vpop.permute.xlu0 %623
  %v629 = vadd.f32 %v326, %v618
  %v630 = vadd.f32 %v329, %v620
  %v631 = vadd.f32 %v332, %v622
  %v632 = vadd.f32 %v335, %v624
  %v633 = vtanh.pop %v629
  %v634 = vtanh.pop %v630
  %v635 = vtanh.pop %v631
  %v636 = vtanh.pop %v632
  %vm637 = vcmask 80960
  %638 = vst.msk [vmem:[#allocation3] sm:$0xff] %vm637, %v633
  %639 = vst.msk [vmem:[#allocation3 + $0x8] sm:$0xff] %vm637, %v634
  %640 = vst.msk [vmem:[#allocation3 + $0x10] sm:$0xff] %vm637, %v635
  %641 = vst.msk [vmem:[#allocation3 + $0x18] sm:$0xff] %vm637, %v636
  %646 = vrot.lane.b32.xlu0 %v633, 120
  %v647 = vpop.permute.xlu0 %646
  %648 = vrot.lane.b32.xlu0 %v634, 120
  %v649 = vpop.permute.xlu0 %648
  %650 = vrot.lane.b32.xlu0 %v635, 120
  %v651 = vpop.permute.xlu0 %650
  %652 = vrot.lane.b32.xlu0 %v636, 120
  %v653 = vpop.permute.xlu0 %652
  %658 = vmatpush.msra.mxu0 0.0
  %659 = vmatpush.msra.mxu0 0.0
  %660 = vmatpush.msra.mxu0 0.0
  %661 = vmatpush.msra.mxu0 0.0
  %662 = vmatpush.msra.mxu0 0.0
  %663 = vmatpush.msra.mxu0 0.0
  %664 = vmatpush.msra.mxu0 0.0
  %665 = vmatpush.msra.mxu0 0.0
  %666 = vmatpush.msra.mxu0 0.0
  %667 = vmatpush.msra.mxu0 0.0
  %668 = vmatpush.msra.mxu0 0.0
  %669 = vmatpush.msra.mxu0 0.0
  %670 = vmatpush.msra.mxu0 %v653
  %671 = vmatpush.msra.mxu0 %v651
  %672 = vmatpush.msra.mxu0 %v649
  %673 = vmatpush.msra.mxu0 %v647
  %674 = vmatmul.f32.gmra.mxu0 %v351
  %v675 = vpop.f32.mrf.mxu0
  %v676 = vadd.f32 0.0, %v675
  %677 = vmatmul.f32.gmra.mxu0 %v354
  %v678 = vpop.f32.mrf.mxu0
  %v679 = vadd.f32 0.0, %v678
  %680 = vmatmul.f32.gmra.mxu0 %v357
  %v681 = vpop.f32.mrf.mxu0
  %v682 = vadd.f32 0.0, %v681
  %683 = vmatmul.f32.gmra.mxu0 %v360
  %v684 = vpop.f32.mrf.mxu0
  %v685 = vadd.f32 0.0, %v684
  %686 = vdwg.mxu0
  %691 = vrot.lane.b32.xlu0 %v676, 10
  %v692 = vpop.permute.xlu0 %691
  %693 = vrot.lane.b32.xlu0 %v679, 10
  %v694 = vpop.permute.xlu0 %693
  %695 = vrot.lane.b32.xlu0 %v682, 10
  %v696 = vpop.permute.xlu0 %695
  %697 = vrot.lane.b32.xlu0 %v685, 10
  %v698 = vpop.permute.xlu0 %697
  %v703 = vadd.f32 %v326, %v692
  %v704 = vadd.f32 %v329, %v694
  %v705 = vadd.f32 %v332, %v696
  %v706 = vadd.f32 %v335, %v698
  %v707 = vtanh.pop %v703
  %v708 = vtanh.pop %v704
  %v709 = vtanh.pop %v705
  %v710 = vtanh.pop %v706
  %vm711 = vcmask 97360
  %712 = vst.msk [vmem:[#allocation3] sm:$0xff] %vm711, %v707
  %713 = vst.msk [vmem:[#allocation3 + $0x8] sm:$0xff] %vm711, %v708
  %714 = vst.msk [vmem:[#allocation3 + $0x10] sm:$0xff] %vm711, %v709
  %715 = vst.msk [vmem:[#allocation3 + $0x18] sm:$0xff] %vm711, %v710
  %720 = vrot.lane.b32.xlu0 %v707, 118
  %v721 = vpop.permute.xlu0 %720
  %722 = vrot.lane.b32.xlu0 %v708, 118
  %v723 = vpop.permute.xlu0 %722
  %724 = vrot.lane.b32.xlu0 %v709, 118
  %v725 = vpop.permute.xlu0 %724
  %726 = vrot.lane.b32.xlu0 %v710, 118
  %v727 = vpop.permute.xlu0 %726
  %732 = vmatpush.msra.mxu0 0.0
  %733 = vmatpush.msra.mxu0 0.0
  %734 = vmatpush.msra.mxu0 0.0
  %735 = vmatpush.msra.mxu0 0.0
  %736 = vmatpush.msra.mxu0 0.0
  %737 = vmatpush.msra.mxu0 0.0
  %738 = vmatpush.msra.mxu0 0.0
  %739 = vmatpush.msra.mxu0 0.0
  %740 = vmatpush.msra.mxu0 0.0
  %741 = vmatpush.msra.mxu0 0.0
  %742 = vmatpush.msra.mxu0 0.0
  %743 = vmatpush.msra.mxu0 0.0
  %744 = vmatpush.msra.mxu0 %v727
  %745 = vmatpush.msra.mxu0 %v725
  %746 = vmatpush.msra.mxu0 %v723
  %747 = vmatpush.msra.mxu0 %v721
  %748 = vmatmul.f32.gmra.mxu0 %v351
  %v749 = vpop.f32.mrf.mxu0
  %v750 = vadd.f32 0.0, %v749
  %751 = vmatmul.f32.gmra.mxu0 %v354
  %v752 = vpop.f32.mrf.mxu0
  %v753 = vadd.f32 0.0, %v752
  %754 = vmatmul.f32.gmra.mxu0 %v357
  %v755 = vpop.f32.mrf.mxu0
  %v756 = vadd.f32 0.0, %v755
  %757 = vmatmul.f32.gmra.mxu0 %v360
  %v758 = vpop.f32.mrf.mxu0
  %v759 = vadd.f32 0.0, %v758
  %760 = vdwg.mxu0
  %765 = vrot.lane.b32.xlu0 %v750, 12
  %v766 = vpop.permute.xlu0 %765
  %767 = vrot.lane.b32.xlu0 %v753, 12
  %v768 = vpop.permute.xlu0 %767
  %769 = vrot.lane.b32.xlu0 %v756, 12
  %v770 = vpop.permute.xlu0 %769
  %771 = vrot.lane.b32.xlu0 %v759, 12
  %v772 = vpop.permute.xlu0 %771
  %v777 = vadd.f32 %v326, %v766
  %v778 = vadd.f32 %v329, %v768
  %v779 = vadd.f32 %v332, %v770
  %v780 = vadd.f32 %v335, %v772
  %v781 = vtanh.pop %v777
  %v782 = vtanh.pop %v778
  %v783 = vtanh.pop %v779
  %v784 = vtanh.pop %v780
  %vm785 = vcmask 113760
  %786 = vst.msk [vmem:[#allocation3] sm:$0xff] %vm785, %v781
  %787 = vst.msk [vmem:[#allocation3 + $0x8] sm:$0xff] %vm785, %v782
  %788 = vst.msk [vmem:[#allocation3 + $0x10] sm:$0xff] %vm785, %v783
  %789 = vst.msk [vmem:[#allocation3 + $0x18] sm:$0xff] %vm785, %v784
  %794 = vrot.lane.b32.xlu0 %v781, 116
  %v795 = vpop.permute.xlu0 %794
  %796 = vrot.lane.b32.xlu0 %v782, 116
  %v797 = vpop.permute.xlu0 %796
  %798 = vrot.lane.b32.xlu0 %v783, 116
  %v799 = vpop.permute.xlu0 %798
  %800 = vrot.lane.b32.xlu0 %v784, 116
  %v801 = vpop.permute.xlu0 %800
  %806 = vmatpush.msra.mxu0 0.0
  %807 = vmatpush.msra.mxu0 0.0
  %808 = vmatpush.msra.mxu0 0.0
  %809 = vmatpush.msra.mxu0 0.0
  %810 = vmatpush.msra.mxu0 0.0
  %811 = vmatpush.msra.mxu0 0.0
  %812 = vmatpush.msra.mxu0 0.0
  %813 = vmatpush.msra.mxu0 0.0
  %814 = vmatpush.msra.mxu0 0.0
  %815 = vmatpush.msra.mxu0 0.0
  %816 = vmatpush.msra.mxu0 0.0
  %817 = vmatpush.msra.mxu0 0.0
  %818 = vmatpush.msra.mxu0 %v801
  %819 = vmatpush.msra.mxu0 %v799
  %820 = vmatpush.msra.mxu0 %v797
  %821 = vmatpush.msra.mxu0 %v795
  %822 = vmatmul.f32.gmra.mxu0 %v351
  %v823 = vpop.f32.mrf.mxu0
  %v824 = vadd.f32 0.0, %v823
  %825 = vmatmul.f32.gmra.mxu0 %v354
  %v826 = vpop.f32.mrf.mxu0
  %v827 = vadd.f32 0.0, %v826
  %828 = vmatmul.f32.gmra.mxu0 %v357
  %v829 = vpop.f32.mrf.mxu0
  %v830 = vadd.f32 0.0, %v829
  %831 = vmatmul.f32.gmra.mxu0 %v360
  %v832 = vpop.f32.mrf.mxu0
  %v833 = vadd.f32 0.0, %v832
  %834 = vdwg.mxu0
  %839 = vrot.lane.b32.xlu0 %v824, 14
  %v840 = vpop.permute.xlu0 %839
  %841 = vrot.lane.b32.xlu0 %v827, 14
  %v842 = vpop.permute.xlu0 %841
  %843 = vrot.lane.b32.xlu0 %v830, 14
  %v844 = vpop.permute.xlu0 %843
  %845 = vrot.lane.b32.xlu0 %v833, 14
  %v846 = vpop.permute.xlu0 %845
  %v851 = vadd.f32 %v326, %v840
  %v852 = vadd.f32 %v329, %v842
  %v853 = vadd.f32 %v332, %v844
  %v854 = vadd.f32 %v335, %v846
  %v855 = vtanh.pop %v851
  %v856 = vtanh.pop %v852
  %v857 = vtanh.pop %v853
  %v858 = vtanh.pop %v854
  %vm859 = vcmask 130160
  %860 = vst.msk [vmem:[#allocation3] sm:$0xff] %vm859, %v855
  %861 = vst.msk [vmem:[#allocation3 + $0x8] sm:$0xff] %vm859, %v856
  %862 = vst.msk [vmem:[#allocation3 + $0x10] sm:$0xff] %vm859, %v857
  %863 = vst.msk [vmem:[#allocation3 + $0x18] sm:$0xff] %vm859, %v858
  %v864 = vld [vmem:[%s9] sm:$0xff]
  %v865 = vld [vmem:[%s9 + $0x8] sm:$0xff]
  %v866 = vld [vmem:[#allocation3] sm:$0xff]
  %v867 = vld [vmem:[#allocation3 + $0x8] sm:$0xff]
  %v868 = vld [vmem:[#allocation3 + $0x10] sm:$0xff]
  %v869 = vld [vmem:[#allocation3 + $0x18] sm:$0xff]
  %v870 = vld [vmem:[%s10] sm:$0xff]
  %v871 = vld [vmem:[%s10 + $0x8] sm:$0xff]
  %873 = vset.pattern.permute.xlu0 0
  %874 = vperm.xlu0 %873, %v870
  %v875 = vpop.permute.xlu0 %874
  %878 = vset.pattern.permute.xlu0 0
  %879 = vperm.xlu0 %878, %v871
  %v880 = vpop.permute.xlu0 %879
  %v883 = vsel %vm295, %v864, 0
  %v886 = vsel %vm295, %v865, 0
  %888 = vmatpush.msra.mxu0 0.0
  %889 = vmatpush.msra.mxu0 0.0
  %890 = vmatpush.msra.mxu0 0.0
  %891 = vmatpush.msra.mxu0 0.0
  %892 = vmatpush.msra.mxu0 0.0
  %893 = vmatpush.msra.mxu0 0.0
  %894 = vmatpush.msra.mxu0 0.0
  %895 = vmatpush.msra.mxu0 0.0
  %896 = vmatpush.msra.mxu0 0.0
  %897 = vmatpush.msra.mxu0 0.0
  %898 = vmatpush.msra.mxu0 0.0
  %899 = vmatpush.msra.mxu0 0.0
  %900 = vmatpush.msra.mxu0 %v869
  %901 = vmatpush.msra.mxu0 %v868
  %902 = vmatpush.msra.mxu0 %v867
  %903 = vmatpush.msra.mxu0 %v866
  %904 = vmatmul.f32.gmra.mxu0 %v883
  %v905 = vpop.f32.mrf.mxu0
  %v906 = vadd.f32 %v875, %v905
  %907 = vmatmul.f32.gmra.mxu0 %v886
  %v908 = vpop.f32.mrf.mxu0
  %v909 = vadd.f32 %v880, %v908
  %910 = vdwg.mxu0
  %v911 = vmax.f32 %v906, 0.0
  %v912 = vmax.f32 %v909, 0.0
  %v913 = vld [vmem:[%s11] sm:$0x3f]
  %v914 = vld [vmem:[%s12] sm:$0x3f]
  %916 = vset.pattern.permute.xlu0 0
  %917 = vperm.xlu0 %916, %v914
  %v918 = vpop.permute.xlu0 %917
  %v921 = vsel %vm227, %v913, 0
  %923 = vmatpush.msra.mxu0 0.0
  %924 = vmatpush.msra.mxu0 0.0
  %925 = vmatpush.msra.mxu0 0.0
  %926 = vmatpush.msra.mxu0 0.0
  %927 = vmatpush.msra.mxu0 0.0
  %928 = vmatpush.msra.mxu0 0.0
  %929 = vmatpush.msra.mxu0 0.0
  %930 = vmatpush.msra.mxu0 0.0
  %931 = vmatpush.msra.mxu0 0.0
  %932 = vmatpush.msra.mxu0 0.0
  %933 = vmatpush.msra.mxu0 0.0
  %934 = vmatpush.msra.mxu0 0.0
  %935 = vmatpush.msra.mxu0 0.0
  %936 = vmatpush.msra.mxu0 0.0
  %937 = vmatpush.msra.mxu0 %v912
  %938 = vmatpush.msra.mxu0 %v911
  %939 = vmatmul.f32.gmra.mxu0 %v921
  %v940 = vpop.f32.mrf.mxu0
  %v941 = vadd.f32 %v918, %v940
  %942 = vdwg.mxu0
  %943 = vst.msk [vmem:[%s13] sm:$0x3f] %vm233, %v941
  // Predicated region
  $region54: #{citybike_forward.1} parent=0 // pred_check
    _
  $region55: #{citybike_forward.1} parent=0 // pred_check_branch
    %945 = sbr.rel (0) target = $region57
  $region56: #{citybike_forward.1} parent=0 // pred_region
    _
  $region57: #{citybike_forward.1} parent=0 // pred_fallthru
    _
  // Predicated region
  $region58: #{citybike_forward.1} parent=0 // pred_check
    _
  $region59: #{citybike_forward.1} parent=0 // pred_check_branch
    %947 = sbr.rel (0) target = $region61
  $region60: #{citybike_forward.1} parent=0 // pred_region
    _
  $region61: #{citybike_forward.1} parent=0 // pred_fallthru
    _

</llo_original>
